<compile_context>
chip_gen: v7x
topology: tpu7x:2x2x1
jax: 0.10.0
libtpu: 0.0.40
codegen_flags: <defaults>
</compile_context>

<pallas_src>
import math
import functools

import jax
import jax.numpy as jnp
from jax.experimental import pallas as pl
from jax.experimental.pallas import tpu as pltpu

BN_EPS = 1e-5
BN_SCALE = 1.0 / math.sqrt(1.0 + BN_EPS)   # eval-mode BN with default stats
GROUPS = 32
BASE_WIDTH = 4


# ----------------------------------------------------------------------------
# helpers
# ----------------------------------------------------------------------------
def _rup(x, m):
    return ((x + m - 1) // m) * m


def _m_plan(m):
    """(padded rows, row tile).  Never pad when M is already 8-aligned."""
    if m % 8 == 0:
        if m <= 512:
            return m, m
        for t in (512, 448, 384, 320, 256, 192, 128):
            if m % t == 0:
                return m, t
        mp = _rup(m, 256)
        return mp, 256
    if m <= 512:
        mp = _rup(m, 8)
        return mp, mp
    mp = _rup(m, 256)
    return mp, 256


# ----------------------------------------------------------------------------
# Single-K-step matmul kernel: out = act(a @ b [+ bias] [+ residual]).
# a/b/residual bf16, f32 MXU accumulation + f32 epilogue, no accumulator scratch.
# ----------------------------------------------------------------------------
def _mm_kernel(*refs, relu, has_bias, has_res):
    a_ref, b_ref = refs[0], refs[1]
    idx = 2
    bias_ref = res_ref = None
    if has_bias:
        bias_ref = refs[idx]; idx += 1
    if has_res:
        res_ref = refs[idx]; idx += 1
    o_ref = refs[idx]

    y = jnp.dot(a_ref[...], b_ref[...], preferred_element_type=jnp.float32)
    if has_bias:
        y = y + bias_ref[...]
    if has_res:
        y = y + res_ref[...].astype(jnp.float32)
    if relu:
        y = jnp.maximum(y, 0.0)
    o_ref[...] = y.astype(o_ref.dtype)


def matmul_fused(a, w, *, bias=None, relu=False, residual=None,
                 out_dtype=jnp.bfloat16):
    """a: (M, K); w: bf16 (K, Np) with Np % 128 == 0; optional bias (1, Np) f32."""
    M, K = a.shape
    Kw, Np = w.shape
    assert Kw == K, (Kw, K)
    Mp, tm = _m_plan(M)
    tn = 256 if Np % 256 == 0 else 128

    a = a.astype(jnp.bfloat16)
    if Mp != M:
        a = jnp.pad(a, ((0, Mp - M), (0, 0)))

    args = [a, w]
    in_specs = [
        pl.BlockSpec((tm, K), lambda i, j: (i, 0)),
        pl.BlockSpec((K, tn), lambda i, j: (0, j)),
    ]
    has_bias = bias is not None
    if has_bias:
        args.append(bias)
        in_specs.append(pl.BlockSpec((1, tn), lambda i, j: (0, j)))
    has_res = residual is not None
    if has_res:
        r = residual.astype(jnp.bfloat16)
        if r.shape != (Mp, Np):
            r = jnp.pad(r, ((0, Mp - r.shape[0]), (0, Np - r.shape[1])))
        args.append(r)
        in_specs.append(pl.BlockSpec((tm, tn), lambda i, j: (i, j)))

    out = pl.pallas_call(
        functools.partial(_mm_kernel, relu=relu, has_bias=has_bias,
                          has_res=has_res),
        out_shape=jax.ShapeDtypeStruct((Mp, Np), out_dtype),
        grid_spec=pltpu.PrefetchScalarGridSpec(
            num_scalar_prefetch=0,
            grid=(Mp // tm, Np // tn),
            in_specs=in_specs,
            out_specs=pl.BlockSpec((tm, tn), lambda i, j: (i, j)),
        ),
        compiler_params=pltpu.CompilerParams(
            dimension_semantics=("parallel", "parallel")),
    )(*args)
    return out[:M] if Mp != M else out


# ----------------------------------------------------------------------------
# Lane-packed grouped matmul: A is the (M, cin*9) im2col buffer with K order
# (channel, tap); each 128-lane output block j contracts the contiguous K slab
# [j*Kb, (j+1)*Kb) against a block-diagonal (Kb, 128) weight built at init.
# Output comes back directly in natural NHWC channel order.
# ----------------------------------------------------------------------------
def grouped_matmul_packed(a, w2, nblocks, Kb, *, relu, out_dtype=jnp.bfloat16):
    M, Ktot = a.shape
    assert Ktot == nblocks * Kb, (Ktot, nblocks, Kb)
    Mp, tm = _m_plan(M)
    a = a.astype(jnp.bfloat16)
    if Mp != M:
        a = jnp.pad(a, ((0, Mp - M), (0, 0)))

    out = pl.pallas_call(
        functools.partial(_mm_kernel, relu=relu, has_bias=False, has_res=False),
        out_shape=jax.ShapeDtypeStruct((Mp, nblocks * 128), out_dtype),
        grid_spec=pltpu.PrefetchScalarGridSpec(
            num_scalar_prefetch=0,
            grid=(Mp // tm, nblocks),
            in_specs=[
                pl.BlockSpec((tm, Kb), lambda i, j: (i, j)),    # K slab = N block
                pl.BlockSpec((Kb, 128), lambda i, j: (j, 0)),
            ],
            out_specs=pl.BlockSpec((tm, 128), lambda i, j: (i, j)),
        ),
        compiler_params=pltpu.CompilerParams(
            dimension_semantics=("parallel", "parallel")),
    )(a, w2)
    return out[:M] if Mp != M else out


# ----------------------------------------------------------------------------
# Weight preparation (done ONCE at init): fold eval-mode BN scale, reshape to
# matmul layout, pad K/N only where required, cast to bf16.
# ----------------------------------------------------------------------------
def _prep_dense_conv(w, stride, padding, *, k_pad_to=None, n_pad_to=None):
    cout, cin, kh, kw = w.shape
    K = cin * kh * kw
    Kp = k_pad_to if k_pad_to is not None else K
    Np = n_pad_to if n_pad_to is not None else cout
    wm = jnp.transpose(w, (1, 2, 3, 0)).reshape(K, cout) * BN_SCALE
    wm = jnp.pad(wm, ((0, Kp - K), (0, Np - cout))).astype(jnp.bfloat16)
    return {'kind': 'dense', 'w': wm, 'Kp': Kp, 'Np': Np,
            'kh': kh, 'kw': kw, 'stride': stride, 'pad': padding}


def _prep_group_conv(w, stride, padding, groups):
    cout, cg, kh, kw = w.shape
    coutg = cout // groups
    Kg = cg * kh * kw
    gb = 128 // coutg                # groups packed per 128-lane output block
    nblocks = groups // gb           # = cout // 128
    Kb = gb * Kg                     # per-block contraction (1152 for every stage)
    wg = w.reshape(groups, coutg, cg, kh, kw)
    wg = jnp.transpose(wg, (0, 2, 3, 4, 1)).reshape(groups, Kg, coutg) * BN_SCALE
    wgb = wg.reshape(nblocks, gb, Kg, coutg)
    eye = jnp.eye(gb, dtype=wgb.dtype)
    wb = jnp.einsum('ngkc,gh->ngkhc', wgb, eye)          # block-diagonal per block
    w2 = wb.reshape(nblocks * Kb, gb * coutg).astype(jnp.bfloat16)   # (.., 128)
    return {'kind': 'group', 'w': w2, 'nblocks': nblocks, 'Kb': Kb,
            'stride': stride, 'pad': padding}


# ----------------------------------------------------------------------------
# Convolutions (im2col -> Pallas matmul).  Eval-mode BN folded into weights.
# ----------------------------------------------------------------------------
def conv_dense(x, cp, *, relu, residual=None, out_dtype=jnp.bfloat16):
    """x: (N,H,W,Cin) NHWC bf16.  Optional fused residual-add + ReLU epilogue."""
    n, h, w_, cin = x.shape
    kh, kw, stride, pad = cp['kh'], cp['kw'], cp['stride'], cp['pad']
    ho = (h + 2 * pad - kh) // stride + 1
    wo = (w_ + 2 * pad - kw) // stride + 1
    m = n * ho * wo

    if kh == 1 and kw == 1 and pad == 0:
        xs = x[:, ::stride, ::stride, :] if stride != 1 else x
        patches = xs.reshape(m, cin)
    else:
        # TODO(synk): stream the kh*kw taps on a grid axis instead of
        # materializing the im2col buffer in HBM (would halve activation traffic).
        xp = jnp.pad(x, ((0, 0), (pad, pad), (pad, pad), (0, 0)))
        pats = [xp[:, ki:ki + stride * ho:stride, kj:kj + stride * wo:stride, :]
                for ki in range(kh) for kj in range(kw)]
        patches = jnp.stack(pats, axis=-1).reshape(m, cin * kh * kw)

    if patches.shape[1] != cp['Kp']:                      # stem only (K=147->256)
        patches = jnp.pad(patches, ((0, 0), (0, cp['Kp'] - patches.shape[1])))

    res2d = residual.reshape(m, cp['Np']) if residual is not None else None
    out = matmul_fused(patches, cp['w'], relu=relu, residual=res2d,
                       out_dtype=out_dtype)
    return out.reshape(n, ho, wo, cp['Np'])


def conv_group(x, cp, *, relu=True):
    """Grouped 3x3 conv via lane-packed block-diagonal matmul (cout == cin)."""
    n, h, w_, cin = x.shape
    s, pad = cp['stride'], cp['pad']
    ho = (h + 2 * pad - 3) // s + 1
    wo = (w_ + 2 * pad - 3) // s + 1
    m = n * ho * wo

    xp = jnp.pad(x, ((0, 0), (pad, pad), (pad, pad), (0, 0)))
    pats = [xp[:, ki:ki + s * ho:s, kj:kj + s * wo:s, :]
            for ki in range(3) for kj in range(3)]
    # (n,ho,wo,cin,9) -> (m, cin*9): K order (channel, tap) matches the packed
    # weight; no per-group padding, no transposes, no output slicing.
    patches = jnp.stack(pats, axis=-1).reshape(m, cin * 9)

    out = grouped_matmul_packed(patches, cp['w'], cp['nblocks'], cp['Kb'],
                                relu=relu)
    return out.reshape(n, ho, wo, cin)


def maxpool_3x3_s2_p1(x):
    n, h, w_, c = x.shape
    ho = (h + 2 - 3) // 2 + 1
    wo = (w_ + 2 - 3) // 2 + 1
    xp = jnp.pad(x, ((0, 0), (1, 1), (1, 1), (0, 0)), constant_values=-jnp.inf)
    out = None
    for ki in range(3):
        for kj in range(3):
            s = xp[:, ki:ki + 2 * ho:2, kj:kj + 2 * wo:2, :]
            out = s if out is None else jnp.maximum(out, s)
    return out


# ----------------------------------------------------------------------------
# Fused LSTM recurrence: w_hh resident in VMEM, gates + c/h update in-kernel.
# ----------------------------------------------------------------------------
def _sigmoid(x):
    return 1.0 / (1.0 + jnp.exp(-x))


def _lstm_kernel(xg_ref, whh_hbm, out_ref, w_vmem, h_sc, c_sc, dma_sem, *, H):
    t = pl.program_id(0)

    @pl.when(t == 0)
    def _():
        cp = pltpu.make_async_copy(whh_hbm, w_vmem, dma_sem)
        cp.start()
        cp.wait()
        h_sc[...] = jnp.zeros_like(h_sc)
        c_sc[...] = jnp.zeros_like(c_sc)

    h_prev = h_sc[...].astype(jnp.bfloat16)

    def gate(k):   # per-gate dot keeps live values small (Bp x H per gate)
        return (xg_ref[0, :, k * H:(k + 1) * H]
                + jnp.dot(h_prev, w_vmem[k], preferred_element_type=jnp.float32))

    i_g = _sigmoid(gate(0))
    f_g = _sigmoid(gate(1))
    g_g = jnp.tanh(gate(2))
    o_g = _sigmoid(gate(3))
    c = f_g * c_sc[...] + i_g * g_g
    h = o_g * jnp.tanh(c)
    c_sc[...] = c
    h_sc[...] = h
    out_ref[0] = h


def lstm_forward(feats, params):
    """feats: (T, B, In) — dim 0 is time (PyTorch batch_first=False); no bias."""
    T, B, In = feats.shape
    H = params['hidden_dim']
    # input projection for all timesteps in a single matmul
    xg = matmul_fused(feats.reshape(T * B, In), params['w_ih_t'],
                      out_dtype=jnp.float32).reshape(T, B, 4 * H)
    Bp = _rup(max(B, 8), 8)
    if Bp != B:
        xg = jnp.pad(xg, ((0, 0), (0, Bp - B), (0, 0)))

    out = pl.pallas_call(
        functools.partial(_lstm_kernel, H=H),
        out_shape=jax.ShapeDtypeStruct((T, Bp, H), jnp.float32),
        grid_spec=pltpu.PrefetchScalarGridSpec(
            num_scalar_prefetch=0,
            grid=(T,),
            in_specs=[
                pl.BlockSpec((1, Bp, 4 * H), lambda t: (t, 0, 0)),
                pl.BlockSpec(memory_space=pl.ANY),   # w_hh stays in HBM
            ],
            out_specs=pl.BlockSpec((1, Bp, H), lambda t: (t, 0, 0)),
            scratch_shapes=[
                pltpu.VMEM((4, H, H), jnp.bfloat16),   # resident recurrent weight
                pltpu.VMEM((Bp, H), jnp.float32),      # h
                pltpu.VMEM((Bp, H), jnp.float32),      # c
                pltpu.SemaphoreType.DMA,
            ],
        ),
        compiler_params=pltpu.CompilerParams(
            dimension_semantics=("arbitrary",),
            vmem_limit_bytes=48 * 1024 * 1024),
    )(xg, params['w_hh_g'])
    return out[:, :B, :]


# ----------------------------------------------------------------------------
# Parameters (deterministic, synthetic — NOT pretrained weights).
# ----------------------------------------------------------------------------
class ParamGen:
    def __init__(self, seed=0):
        self.key = jax.random.PRNGKey(seed)
        self.i = 0

    def _next(self):
        self.i += 1
        return jax.random.fold_in(self.key, self.i)

    def conv(self, cout, cin_per_group, k):
        fan_in = cin_per_group * k * k
        std = math.sqrt(2.0 / fan_in)
        return std * jax.random.normal(self._next(),
                                       (cout, cin_per_group, k, k), jnp.float32)

    def uniform(self, shape, bound):
        return jax.random.uniform(self._next(), shape, jnp.float32,
                                  -bound, bound)


def make_backbone_params(pg):
    # stem output is carried channel-padded to 128 (lane-dense) — layer1-block0
    # weights absorb the extra zero channels at init, nothing is padded at runtime.
    p = {'stem': _prep_dense_conv(pg.conv(64, 3, 7), 2, 3,
                                  k_pad_to=256, n_pad_to=128)}
    layers = []
    inplanes = 64
    carried = 128
    for planes, n_blocks, stride in [(64, 3, 1), (128, 4, 2),
                                     (256, 6, 2), (512, 3, 2)]:
        width = int(planes * (BASE_WIDTH / 64.0)) * GROUPS
        blocks = []
        for b in range(n_blocks):
            s = stride if b == 0 else 1
            kpad = carried if carried != inplanes else None
            blk = {
                'conv1': _prep_dense_conv(pg.conv(width, inplanes, 1), 1, 0,
                                          k_pad_to=kpad),
                'conv2': _prep_group_conv(pg.conv(width, width // GROUPS, 3),
                                          s, 1, GROUPS),
                'conv3': _prep_dense_conv(pg.conv(planes * 4, width, 1), 1, 0),
                'downsample': (_prep_dense_conv(pg.conv(planes * 4, inplanes, 1),
                                                s, 0, k_pad_to=kpad)
                               if (s != 1 or inplanes != planes * 4) else None),
            }
            blocks.append(blk)
            inplanes = planes * 4
            carried = inplanes
        layers.append(blocks)
    p['layers'] = layers
    return p


def model_init(num_classes, seed=0, latent_dim=2048, hidden_dim=2048):
    pg = ParamGen(seed)
    backbone = make_backbone_params(pg)
    k = 1.0 / math.sqrt(hidden_dim)
    kl = 1.0 / math.sqrt(2048)
    # nn.LSTM(latent, hidden, layers, bidirectional): 4th positional arg of nn.LSTM
    # is `bias`, and Model's default bidirectional=False -> bias=False,
    # unidirectional, hidden width 2048 (matches linear1's 2048 input).
    w_ih = pg.uniform((4 * hidden_dim, latent_dim), k)
    w_hh = pg.uniform((4 * hidden_dim, hidden_dim), k)
    lw = pg.uniform((num_classes, 2048), kl)
    lb = pg.uniform((num_classes,), kl)
    ncp = _rup(num_classes, 128)
    return {
        'backbone': backbone,
        'hidden_dim': hidden_dim,
        'w_ih_t': w_ih.T.astype(jnp.bfloat16),                       # (latent, 4H)
        'w_hh_g': jnp.transpose(w_hh.reshape(4, hidden_dim, hidden_dim),
                                (0, 2, 1)).astype(jnp.bfloat16),     # (4, H, H)
        'linear_w': jnp.pad(lw.T, ((0, 0), (0, ncp - num_classes))
                            ).astype(jnp.bfloat16),                  # (2048, ncp)
        'linear_b': jnp.pad(lb, (0, ncp - num_classes)).reshape(1, ncp
                            ).astype(jnp.float32),
        'num_classes': num_classes,
    }


# ----------------------------------------------------------------------------
# Forward pass.
# ----------------------------------------------------------------------------
def bottleneck_forward(x, blk):
    out = conv_dense(x, blk['conv1'], relu=True)
    out = conv_group(out, blk['conv2'], relu=True)
    if blk['downsample'] is not None:
        identity = conv_dense(x, blk['downsample'], relu=False)
    else:
        identity = x
    # residual add + final ReLU fused into conv3's matmul epilogue
    return conv_dense(out, blk['conv3'], relu=True, residual=identity)


def backbone_forward(x_nhwc, p):
    x = conv_dense(x_nhwc, p['stem'], relu=True)
    x = maxpool_3x3_s2_p1(x)
    for blocks in p['layers']:
        for blk in blocks:
            x = bottleneck_forward(x, blk)
    return x   # (N, Hf, Wf, 2048) bf16


def model_forward(params, x):
    """x: (batch, seq, C, H, W) float32, PyTorch NCHW image convention."""
    assert x.ndim == 5
    B, S, C, H, W = x.shape
    imgs = jnp.transpose(x.reshape(B * S, C, H, W), (0, 2, 3, 1)
                         ).astype(jnp.bfloat16)                 # -> NHWC bf16
    fm_nhwc = backbone_forward(imgs, params['backbone'])        # (B*S,Hf,Wf,2048)
    fmap = jnp.transpose(fm_nhwc, (0, 3, 1, 2)).astype(jnp.float32)  # NCHW f32
    pooled = jnp.mean(fm_nhwc.astype(jnp.float32), axis=(1, 2))      # (B*S,2048)
    feats = pooled.reshape(B, S, 2048)
    # nn.LSTM has batch_first=False, so dim 0 (= batch here) is time — this
    # reproduces the reference module's (quirky) axis usage exactly.
    x_lstm = lstm_forward(feats, params)                        # (B, S, 2048)
    last = x_lstm[:, -1, :]                                     # (B, 2048)
    # TODO(synk): Dropout(0.4) and train-mode BN are treated as inference-mode
    # (dropout = identity, BN folded with default running stats).
    logits_p = matmul_fused(last, params['linear_w'], bias=params['linear_b'],
                            out_dtype=jnp.float32)
    logits = logits_p[:, :params['num_classes']]
    return fmap, logits


if __name__ == "__main__":
    num_classes = 2
    B, S, C, H, W = 2, 3, 3, 32, 32
    params = model_init(num_classes, seed=0)
    x = jax.random.normal(jax.random.PRNGKey(0), (B, S, C, H, W), jnp.float32)
    fmap, logits = model_forward(params, x)
    jax.block_until_ready((fmap, logits))
    assert fmap.shape == (B * S, 2048, H // 32, W // 32), fmap.shape
    assert logits.shape == (B, num_classes), logits.shape
    assert bool(jnp.all(jnp.isfinite(logits)))
    print("KERNEL_OK")
</pallas_src>

<mosaic_0001>
module attributes {stable_mosaic.version = 11 : i64} {
  func.func @_mm_kernel(%arg0: i32, %arg1: i32, %arg2: memref<512x256xbf16, #tpu.memory_space<vmem>>, %arg3: memref<256x128xbf16, #tpu.memory_space<vmem>>, %arg4: memref<512x128xbf16, #tpu.memory_space<vmem>>) attributes {dimension_semantics = [#tpu.dimension_semantics<parallel>, #tpu.dimension_semantics<parallel>], iteration_bounds = array<i64: 3, 1>, scalar_prefetch = 0 : i64, scratch_operands = 0 : i64, tpu.core_type = #tpu.core_type<tc>, window_params = [{transform_indices = @transform_0, window_bounds = array<i64: 512, 256>}, {transform_indices = @transform_1, window_bounds = array<i64: 256, 128>}, {transform_indices = @transform_2, window_bounds = array<i64: 512, 128>}]} {
    %c0 = arith.constant 0 : index
    %c0_0 = arith.constant 0 : index
    %0 = vector.load %arg2[%c0, %c0_0] : memref<512x256xbf16, #tpu.memory_space<vmem>>, vector<512x256xbf16>
    %c0_1 = arith.constant 0 : index
    %c0_2 = arith.constant 0 : index
    %1 = vector.load %arg3[%c0_1, %c0_2] : memref<256x128xbf16, #tpu.memory_space<vmem>>, vector<256x128xbf16>
    %cst = arith.constant dense<0.000000e+00> : vector<512x128xf32>
    %2 = tpu.matmul %0, %1, %cst {dimension_numbers = #tpu.dot_dimension_numbers<[1], [0], [0], [1], [0, 0, 1, 1], [], []>} : vector<512x256xbf16>, vector<256x128xbf16>, vector<512x128xf32> -> vector<512x128xf32>
    %cst_3 = arith.constant 0.000000e+00 : f32
    %3 = vector.broadcast %cst_3 : f32 to vector<512x128xf32>
    %4 = arith.maximumf %2, %3 : vector<512x128xf32>
    %5 = arith.truncf %4 : vector<512x128xf32> to vector<512x128xbf16>
    %c0_4 = arith.constant 0 : index
    %c0_5 = arith.constant 0 : index
    %6 = vector.load %arg4[%c0_4, %c0_5] : memref<512x128xbf16, #tpu.memory_space<vmem>>, vector<512x128xbf16>
    tpu.vector_store %arg4[%c0_4, %c0_5], %5 {strides = array<i32>} : memref<512x128xbf16, #tpu.memory_space<vmem>>, vector<512x128xbf16>,
    return
  }
  func.func @transform_0(%arg0: i32, %arg1: i32) -> (i32, i32) {
    %c0_i32 = arith.constant 0 : i32
    %c0_i32_0 = arith.constant 0 : i32
    return %arg0, %c0_i32 : i32, i32
  }
  func.func @transform_1(%arg0: i32, %arg1: i32) -> (i32, i32) {
    %c0_i32 = arith.constant 0 : i32
    %c0_i32_0 = arith.constant 0 : i32
    return %c0_i32, %arg1 : i32, i32
  }
  func.func @transform_2(%arg0: i32, %arg1: i32) -> (i32, i32) {
    %c0_i32 = arith.constant 0 : i32
    return %arg0, %arg1 : i32, i32
  }
}

</mosaic_0001>

<llo_original>
// kernel: tpu_custom_call.1
$region0: #{tpu_custom_call.1}
  #allocation0 [shape = 'u32[]', space=smem, size = 0x4, offset = 0x4, fixed_abs, tag = 'smem constant byte address 0x4 - core index']
  #allocation1 [shape = 'u32[144,128]{1,0:T(1,128)}', space=vmem, size = 0x12000, scoped, tag = 'internal scratch']
  %s0 = inlined_call_operand.hbm [shape: bf16[1536,256], index: 0, kind: input, shape index: {}]
  %s1 = inlined_call_operand.hbm [shape: bf16[256,128], index: 1, kind: input, shape index: {}]
  %s2 = inlined_call_operand.hbm [shape: bf16[1536,128], index: 2, kind: output, shape index: {}]
  %s3 = sld [smem:[#allocation0]]
  $region49: #{tpu_custom_call.1} parent=0
    _
  %s5 = ssub.s32 1, %s3
  %s6 = scalar_select 0, %s5, %s3
  $region1: #{tpu_custom_call.1} parent=0
    #allocation2 [shape = 'u8[524288]{0}', space=vmem, size = 0x80000, scoped, tag = 'input window, operand 0']
    #allocation3 [shape = 's32[2]{0}', space=sflag, size = 0x8, scoped, tag = 'scoped memory for tpu_custom_call.1']
    #allocation4 [shape = 's32[2]{0}', space=sflag, size = 0x8, scoped, tag = 'scoped memory for tpu_custom_call.1']
    #allocation5 [shape = 'u8[65536]{0}', space=vmem, size = 0x10000, scoped, tag = 'input window, operand 1, single buffered']
    #allocation6 [shape = 's32[1]{0}', space=sflag, size = 0x4, scoped, tag = 'scoped memory for tpu_custom_call.1']
    #allocation7 [shape = 'u8[262144]{0}', space=vmem, size = 0x40000, scoped, tag = 'output window, operand 0']
    %7 = vsyncpa [#allocation3], 0
    %s8 = scalar_lea.sflag [#allocation3], 1
    %9 = vsyncpa %s8, 0
    %10 = vsyncpa [#allocation6], 0
    %11 = vsyncpa [#allocation4], 0
    %s12 = scalar_lea.sflag [#allocation4], 1
    %13 = vsyncpa %s12, 0
    loop: start=0, step=1, limit=5
    $region2: #{tpu_custom_call.1} parent=1 // loop_pre_header
      _
    $region3: #{tpu_custom_call.1} parent=1 // loop_header
      %s15 = sphi 0, %s19
      %p16 = scmp.ge.s32.totalorder %s15, 5
      %s22 = sphi 0, %s34
      %s23 = sphi 0, %s30
      %s24 = sphi 0, %s22
      %s25 = sphi 0, %s23
      %s26 = sphi 0, %s24
      %s27 = sphi 0, %s25
      %s37 = sphi 0, %s39
      %s40 = sphi 0, %s37
      %s41 = sphi 0, %s40
      %s57 = sphi 0, %s41
      %s63 = sphi 0, %s65
      %s66 = sphi 0, %s63
      %s67 = sphi 0, %s66
      %s83 = sphi 0, %s67
      %s91 = sphi 0, %s93
      %s94 = sphi 0, %s91
      %s95 = sphi 0, %s94
      %s111 = sphi 0, %s95
    $region4: #{tpu_custom_call.1} parent=1 // loop_header_branch
      %18 = sbr.rel (%p16) target = $region8
    $region5: #{tpu_custom_call.1} parent=1 // loop_body
      %s20 = ssub.s32 %s15, 1
      %s21 = ssub.s32 %s15, 2
      %s28 = sadd.s32 1, %s23
      %p29 = scmp.ge.s32.totalorder %s28, 1
      %s30 = scalar_select %p29, 0, %s28
      %s31 = sadd.s32 1, %s22
      %s32 = scalar_select %p29, %s31, %s22
      %p33 = scmp.ge.s32.totalorder %s32, 3
      %s34 = scalar_select %p33, 0, %s32
      %s35 = ssub.s32 %s22, %s34
      %p36 = scmp.eq.s32.totalorder %s35, 0
      %s38 = sadd.s32 %s37, 1
      %s39 = scalar_select %p36, %s37, %s38
      %p42 = pneg %p36
      %p43 = scmp.eq.s32.totalorder %s15, 2
      %p44 = por %p42, %p43
      %p45 = scmp.ne.s32.totalorder %s37, %s40
      %p46 = scmp.eq.s32.totalorder %s15, 0
      %p47 = por %p45, %p46
      %p48 = scmp.ne.s32.totalorder %s37, %s40
      %p49 = scmp.eq.s32.totalorder %s20, 2
      %p50 = por %p48, %p49
      %p51 = scmp.ne.s32.totalorder %s40, %s41
      %p52 = scmp.eq.s32.totalorder %s20, 0
      %p53 = por %p51, %p52
      %p54 = scmp.ne.s32.totalorder %s40, %s41
      %p55 = scmp.eq.s32.totalorder %s21, 2
      %p56 = por %p54, %p55
      %p58 = scmp.ne.s32.totalorder %s41, %s57
      %p59 = scmp.eq.s32.totalorder %s21, 0
      %p60 = por %p58, %p59
      %s61 = ssub.s32 %s23, %s30
      %p62 = scmp.eq.s32.totalorder %s61, 0
      %s64 = sadd.s32 %s63, 1
      %s65 = scalar_select %p62, %s63, %s64
      %p68 = pneg %p62
      %p69 = scmp.eq.s32.totalorder %s15, 2
      %p70 = por %p68, %p69
      %p71 = scmp.ne.s32.totalorder %s63, %s66
      %p72 = scmp.eq.s32.totalorder %s15, 0
      %p73 = por %p71, %p72
      %p74 = scmp.ne.s32.totalorder %s63, %s66
      %p75 = scmp.eq.s32.totalorder %s20, 2
      %p76 = por %p74, %p75
      %p77 = scmp.ne.s32.totalorder %s66, %s67
      %p78 = scmp.eq.s32.totalorder %s20, 0
      %p79 = por %p77, %p78
      %p80 = scmp.ne.s32.totalorder %s66, %s67
      %p81 = scmp.eq.s32.totalorder %s21, 2
      %p82 = por %p80, %p81
      %p84 = scmp.ne.s32.totalorder %s67, %s83
      %p85 = scmp.eq.s32.totalorder %s21, 0
      %p86 = por %p84, %p85
      %s87 = ssub.s32 %s22, %s34
      %s88 = ssub.s32 %s23, %s30
      %s89 = sor.u32 %s87, %s88
      %p90 = scmp.eq.s32.totalorder %s89, 0
      %s92 = sadd.s32 %s91, 1
      %s93 = scalar_select %p90, %s91, %s92
      %p96 = pneg %p90
      %p97 = scmp.eq.s32.totalorder %s15, 2
      %p98 = por %p96, %p97
      %p99 = scmp.ne.s32.totalorder %s91, %s94
      %p100 = scmp.eq.s32.totalorder %s15, 0
      %p101 = por %p99, %p100
      %p102 = scmp.ne.s32.totalorder %s91, %s94
      %p103 = scmp.eq.s32.totalorder %s20, 2
      %p104 = por %p102, %p103
      %p105 = scmp.ne.s32.totalorder %s94, %s95
      %p106 = scmp.eq.s32.totalorder %s20, 0
      %p107 = por %p105, %p106
      %p108 = scmp.ne.s32.totalorder %s94, %s95
      %p109 = scmp.eq.s32.totalorder %s21, 2
      %p110 = por %p108, %p109
      %p112 = scmp.ne.s32.totalorder %s95, %s111
      %p113 = scmp.eq.s32.totalorder %s21, 0
      %p114 = por %p112, %p113
      %p115 = scmp.le.s32.totalorder 1, %s15
      %p116 = scmp.lt.s32.totalorder %s15, 4
      %p117 = pnand %p115, %p116
      %p118 = pneg %p117
      // Predicated region
      $region9: #{tpu_custom_call.1} parent=5 // pred_check
        _
      $region10: #{tpu_custom_call.1} parent=5 // pred_check_branch
        %120 = sbr.rel (%p117) target = $region12
      $region11: #{tpu_custom_call.1} parent=5 // pred_region
        %s121 = ssub.s32 %s15, 1
        // Predicated region
        $region13: #{tpu_custom_call.1} parent=11 // pred_check
          %p122 = pneg %p79
        $region14: #{tpu_custom_call.1} parent=11 // pred_check_branch
          %124 = sbr.rel (%p122) target = $region16
        $region15: #{tpu_custom_call.1} parent=11 // pred_region
          %s126 = ssub.s32 2048, 2048
          %127 = vsyncadd [#allocation6], %s126
          %s128 = smul.addr %s25, 64
          %s129 = scalar_lea.hbm %s1, %s128
          %s130 = sshll.u32 [#allocation5], 4
          %s131 = int_to_ptr.vmem [resolvable:$true] %s130
          %136 = dma.hbm_to_vmem [thread:$0]  %s129, 2048, %s131, [#allocation6], 64, 64, 4
        $region16: #{tpu_custom_call.1} parent=11 // pred_fallthru
          _
      $region12: #{tpu_custom_call.1} parent=5 // pred_fallthru
        _
      %p137 = scmp.lt.s32.totalorder %s15, 3
      // Predicated region
      $region17: #{tpu_custom_call.1} parent=5 // pred_check
        %p138 = pneg %p137
      $region18: #{tpu_custom_call.1} parent=5 // pred_check_branch
        %140 = sbr.rel (%p138) target = $region20
      $region19: #{tpu_custom_call.1} parent=5 // pred_region
        // Predicated region
        $region21: #{tpu_custom_call.1} parent=19 // pred_check
          %p141 = pneg %p47
        $region22: #{tpu_custom_call.1} parent=19 // pred_check_branch
          %143 = sbr.rel (%p141) target = $region24
        $region23: #{tpu_custom_call.1} parent=19 // pred_region
          %s144 = sand.u32 %s37, 1
          %s145 = scalar_lea.sflag [#allocation3], %s144
          %s146 = sand.u32 %s37, 1
          %s147 = smul.addr %s146, 512
          %s148 = scalar_lea.vmem [#allocation2], %s147
          %s149 = smul.u32 64, %s22
          %s151 = ssub.s32 8192, 8192
          %152 = vsyncadd %s145, %s151
          %s153 = smul.addr %s149, 2
          %s154 = smul.addr %s153, 64
          %s155 = scalar_lea.hbm %s0, %s154
          %s156 = sshll.u32 %s148, 4
          %s157 = int_to_ptr.vmem [resolvable:$true] %s156
          %162 = dma.hbm_to_vmem [thread:$0]  %s155, 8192, %s157, %s145, 128, 128, 8
        $region24: #{tpu_custom_call.1} parent=19 // pred_fallthru
          _
      $region20: #{tpu_custom_call.1} parent=5 // pred_fallthru
        _
      %p163 = scmp.le.s32.totalorder 1, %s15
      %p164 = scmp.lt.s32.totalorder %s15, 4
      %p165 = pnand %p163, %p164
      %p166 = pneg %p165
      // Predicated region
      $region25: #{tpu_custom_call.1} parent=5 // pred_check
        _
      $region26: #{tpu_custom_call.1} parent=5 // pred_check_branch
        %168 = sbr.rel (%p165) target = $region28
      $region27: #{tpu_custom_call.1} parent=5 // pred_region
        %s169 = ssub.s32 %s15, 1
        %s170 = sand.u32 %s40, 1
        %s171 = scalar_lea.sflag [#allocation3], %s170
        %s172 = sand.u32 %s40, 1
        %s173 = smul.addr %s172, 512
        %s174 = scalar_lea.vmem [#allocation2], %s173
        // Predicated region
        $region29: #{tpu_custom_call.1} parent=27 // pred_check
          %p175 = pneg %p53
        $region30: #{tpu_custom_call.1} parent=27 // pred_check_branch
          %177 = sbr.rel (%p175) target = $region32
        $region31: #{tpu_custom_call.1} parent=27 // pred_region
          %178 = dma.done %s171, 8192
        $region32: #{tpu_custom_call.1} parent=27 // pred_fallthru
          _
        // Predicated region
        $region33: #{tpu_custom_call.1} parent=27 // pred_check
          %p179 = pneg %p79
        $region34: #{tpu_custom_call.1} parent=27 // pred_check_branch
          %181 = sbr.rel (%p179) target = $region36
        $region35: #{tpu_custom_call.1} parent=27 // pred_region
          %182 = dma.done [#allocation6], 2048
        $region36: #{tpu_custom_call.1} parent=27 // pred_fallthru
          _
        %s183 = sand.u32 %s40, 1
        %s184 = scalar_lea.sflag [#allocation3], %s183
        %s185 = sand.u32 %s40, 1
        %s186 = smul.addr %s185, 512
        %s187 = scalar_lea.vmem [#allocation2], %s186
        %p188 = pneg %p53
        %p189 = pneg %p50
        %p190 = pneg %p79
        %p191 = pneg %p76
        %p192 = pneg %p107
        %p193 = pneg %p104
        %s194 = sand.u32 %s94, 1
        %s195 = scalar_lea.sflag [#allocation4], %s194
        %s196 = sand.u32 %s94, 1
        %s197 = smul.addr %s196, 256
        %s198 = scalar_lea.vmem [#allocation7], %s197
        %s199 = smul.u32 64, %s24
        %s200 = smul.u32 64, %s24
        %v202 = vld [vmem:[%s174] sm:$0xff]
        %v203 = vld [vmem:[%s174 + $0x8] sm:$0xff]
        %v204 = vld [vmem:[%s174 + $0x10] sm:$0xff]
        %v205 = vld [vmem:[%s174 + $0x18] sm:$0xff]
        %v206 = vld [vmem:[%s174 + $0x20] sm:$0xff]
        %v207 = vld [vmem:[%s174 + $0x28] sm:$0xff]
        %v208 = vld [vmem:[%s174 + $0x30] sm:$0xff]
        %v209 = vld [vmem:[%s174 + $0x38] sm:$0xff]
        %v210 = vld [vmem:[%s174 + $0x40] sm:$0xff]
        %v211 = vld [vmem:[%s174 + $0x48] sm:$0xff]
        %v212 = vld [vmem:[%s174 + $0x50] sm:$0xff]
        %v213 = vld [vmem:[%s174 + $0x58] sm:$0xff]
        %v214 = vld [vmem:[%s174 + $0x60] sm:$0xff]
        %v215 = vld [vmem:[%s174 + $0x68] sm:$0xff]
        %v216 = vld [vmem:[%s174 + $0x70] sm:$0xff]
        %v217 = vld [vmem:[%s174 + $0x78] sm:$0xff]
        %v218 = vld [vmem:[%s174 + $0x80] sm:$0xff]
        %v219 = vld [vmem:[%s174 + $0x88] sm:$0xff]
        %v220 = vld [vmem:[%s174 + $0x90] sm:$0xff]
        %v221 = vld [vmem:[%s174 + $0x98] sm:$0xff]
        %v222 = vld [vmem:[%s174 + $0xa0] sm:$0xff]
        %v223 = vld [vmem:[%s174 + $0xa8] sm:$0xff]
        %v224 = vld [vmem:[%s174 + $0xb0] sm:$0xff]
        %v225 = vld [vmem:[%s174 + $0xb8] sm:$0xff]
        %v226 = vld [vmem:[%s174 + $0xc0] sm:$0xff]
        %v227 = vld [vmem:[%s174 + $0xc8] sm:$0xff]
        %v228 = vld [vmem:[%s174 + $0xd0] sm:$0xff]
        %v229 = vld [vmem:[%s174 + $0xd8] sm:$0xff]
        %v230 = vld [vmem:[%s174 + $0xe0] sm:$0xff]
        %v231 = vld [vmem:[%s174 + $0xe8] sm:$0xff]
        %v232 = vld [vmem:[%s174 + $0xf0] sm:$0xff]
        %v233 = vld [vmem:[%s174 + $0xf8] sm:$0xff]
        %v234 = vld [vmem:[%s174 + $0x100] sm:$0xff]
        %v235 = vld [vmem:[%s174 + $0x108] sm:$0xff]
        %v236 = vld [vmem:[%s174 + $0x110] sm:$0xff]
        %v237 = vld [vmem:[%s174 + $0x118] sm:$0xff]
        %v238 = vld [vmem:[%s174 + $0x120] sm:$0xff]
        %v239 = vld [vmem:[%s174 + $0x128] sm:$0xff]
        %v240 = vld [vmem:[%s174 + $0x130] sm:$0xff]
        %v241 = vld [vmem:[%s174 + $0x138] sm:$0xff]
        %v242 = vld [vmem:[%s174 + $0x140] sm:$0xff]
        %v243 = vld [vmem:[%s174 + $0x148] sm:$0xff]
        %v244 = vld [vmem:[%s174 + $0x150] sm:$0xff]
        %v245 = vld [vmem:[%s174 + $0x158] sm:$0xff]
        %v246 = vld [vmem:[%s174 + $0x160] sm:$0xff]
        %v247 = vld [vmem:[%s174 + $0x168] sm:$0xff]
        %v248 = vld [vmem:[%s174 + $0x170] sm:$0xff]
        %v249 = vld [vmem:[%s174 + $0x178] sm:$0xff]
        %v250 = vld [vmem:[%s174 + $0x180] sm:$0xff]
        %v251 = vld [vmem:[%s174 + $0x188] sm:$0xff]
        %v252 = vld [vmem:[%s174 + $0x190] sm:$0xff]
        %v253 = vld [vmem:[%s174 + $0x198] sm:$0xff]
        %v254 = vld [vmem:[%s174 + $0x1a0] sm:$0xff]
        %v255 = vld [vmem:[%s174 + $0x1a8] sm:$0xff]
        %v256 = vld [vmem:[%s174 + $0x1b0] sm:$0xff]
        %v257 = vld [vmem:[%s174 + $0x1b8] sm:$0xff]
        %v258 = vld [vmem:[%s174 + $0x1c0] sm:$0xff]
        %v259 = vld [vmem:[%s174 + $0x1c8] sm:$0xff]
        %v260 = vld [vmem:[%s174 + $0x1d0] sm:$0xff]
        %v261 = vld [vmem:[%s174 + $0x1d8] sm:$0xff]
        %v262 = vld [vmem:[%s174 + $0x1e0] sm:$0xff]
        %v263 = vld [vmem:[%s174 + $0x1e8] sm:$0xff]
        %v264 = vld [vmem:[%s174 + $0x1f0] sm:$0xff]
        %v265 = vld [vmem:[%s174 + $0x1f8] sm:$0xff]
        %v266 = vld [vmem:[#allocation5] sm:$0xf]
        %v267 = vld [vmem:[#allocation5 + $0x4] sm:$0xf]
        %v268 = vld [vmem:[#allocation5 + $0x8] sm:$0xf]
        %v269 = vld [vmem:[#allocation5 + $0xc] sm:$0xf]
        %v270 = vld [vmem:[#allocation5 + $0x10] sm:$0xf]
        %v271 = vld [vmem:[#allocation5 + $0x14] sm:$0xf]
        %v272 = vld [vmem:[#allocation5 + $0x18] sm:$0xf]
        %v273 = vld [vmem:[#allocation5 + $0x1c] sm:$0xf]
        %v274 = vld [vmem:[#allocation5 + $0x20] sm:$0xf]
        %v275 = vld [vmem:[#allocation5 + $0x24] sm:$0xf]
        %v276 = vld [vmem:[#allocation5 + $0x28] sm:$0xf]
        %v277 = vld [vmem:[#allocation5 + $0x2c] sm:$0xf]
        %v278 = vld [vmem:[#allocation5 + $0x30] sm:$0xf]
        %v279 = vld [vmem:[#allocation5 + $0x34] sm:$0xf]
        %v280 = vld [vmem:[#allocation5 + $0x38] sm:$0xf]
        %v281 = vld [vmem:[#allocation5 + $0x3c] sm:$0xf]
        %v282 = vld [vmem:[#allocation5 + $0x40] sm:$0xf]
        %v283 = vld [vmem:[#allocation5 + $0x44] sm:$0xf]
        %v284 = vld [vmem:[#allocation5 + $0x48] sm:$0xf]
        %v285 = vld [vmem:[#allocation5 + $0x4c] sm:$0xf]
        %v286 = vld [vmem:[#allocation5 + $0x50] sm:$0xf]
        %v287 = vld [vmem:[#allocation5 + $0x54] sm:$0xf]
        %v288 = vld [vmem:[#allocation5 + $0x58] sm:$0xf]
        %v289 = vld [vmem:[#allocation5 + $0x5c] sm:$0xf]
        %v290 = vld [vmem:[#allocation5 + $0x60] sm:$0xf]
        %v291 = vld [vmem:[#allocation5 + $0x64] sm:$0xf]
        %v292 = vld [vmem:[#allocation5 + $0x68] sm:$0xf]
        %v293 = vld [vmem:[#allocation5 + $0x6c] sm:$0xf]
        %v294 = vld [vmem:[#allocation5 + $0x70] sm:$0xf]
        %v295 = vld [vmem:[#allocation5 + $0x74] sm:$0xf]
        %v296 = vld [vmem:[#allocation5 + $0x78] sm:$0xf]
        %v297 = vld [vmem:[#allocation5 + $0x7c] sm:$0xf]
        %v362 = vunpack.c.l.b16 %v202
        %v363 = vunpack.c.h.b16 %v202
        %v364 = vunpack.c.l.b16 %v203
        %v365 = vunpack.c.h.b16 %v203
        %v366 = vunpack.c.l.b16 %v204
        %v367 = vunpack.c.h.b16 %v204
        %v368 = vunpack.c.l.b16 %v205
        %v369 = vunpack.c.h.b16 %v205
        %v370 = vunpack.c.l.b16 %v206
        %v371 = vunpack.c.h.b16 %v206
        %v372 = vunpack.c.l.b16 %v207
        %v373 = vunpack.c.h.b16 %v207
        %v374 = vunpack.c.l.b16 %v208
        %v375 = vunpack.c.h.b16 %v208
        %v376 = vunpack.c.l.b16 %v209
        %v377 = vunpack.c.h.b16 %v209
        %v378 = vunpack.c.l.b16 %v210
        %v379 = vunpack.c.h.b16 %v210
        %v380 = vunpack.c.l.b16 %v211
        %v381 = vunpack.c.h.b16 %v211
        %v382 = vunpack.c.l.b16 %v212
        %v383 = vunpack.c.h.b16 %v212
        %v384 = vunpack.c.l.b16 %v213
        %v385 = vunpack.c.h.b16 %v213
        %v386 = vunpack.c.l.b16 %v214
        %v387 = vunpack.c.h.b16 %v214
        %v388 = vunpack.c.l.b16 %v215
        %v389 = vunpack.c.h.b16 %v215
        %v390 = vunpack.c.l.b16 %v216
        %v391 = vunpack.c.h.b16 %v216
        %v392 = vunpack.c.l.b16 %v217
        %v393 = vunpack.c.h.b16 %v217
        %v394 = vunpack.c.l.b16 %v218
        %v395 = vunpack.c.h.b16 %v218
        %v396 = vunpack.c.l.b16 %v219
        %v397 = vunpack.c.h.b16 %v219
        %v398 = vunpack.c.l.b16 %v220
        %v399 = vunpack.c.h.b16 %v220
        %v400 = vunpack.c.l.b16 %v221
        %v401 = vunpack.c.h.b16 %v221
        %v402 = vunpack.c.l.b16 %v222
        %v403 = vunpack.c.h.b16 %v222
        %v404 = vunpack.c.l.b16 %v223
        %v405 = vunpack.c.h.b16 %v223
        %v406 = vunpack.c.l.b16 %v224
        %v407 = vunpack.c.h.b16 %v224
        %v408 = vunpack.c.l.b16 %v225
        %v409 = vunpack.c.h.b16 %v225
        %v410 = vunpack.c.l.b16 %v226
        %v411 = vunpack.c.h.b16 %v226
        %v412 = vunpack.c.l.b16 %v227
        %v413 = vunpack.c.h.b16 %v227
        %v414 = vunpack.c.l.b16 %v228
        %v415 = vunpack.c.h.b16 %v228
        %v416 = vunpack.c.l.b16 %v229
        %v417 = vunpack.c.h.b16 %v229
        %v418 = vunpack.c.l.b16 %v230
        %v419 = vunpack.c.h.b16 %v230
        %v420 = vunpack.c.l.b16 %v231
        %v421 = vunpack.c.h.b16 %v231
        %v422 = vunpack.c.l.b16 %v232
        %v423 = vunpack.c.h.b16 %v232
        %v424 = vunpack.c.l.b16 %v233
        %v425 = vunpack.c.h.b16 %v233
        %v426 = vunpack.c.l.b16 %v234
        %v427 = vunpack.c.h.b16 %v234
        %v428 = vunpack.c.l.b16 %v235
        %v429 = vunpack.c.h.b16 %v235
        %v430 = vunpack.c.l.b16 %v236
        %v431 = vunpack.c.h.b16 %v236
        %v432 = vunpack.c.l.b16 %v237
        %v433 = vunpack.c.h.b16 %v237
        %v434 = vunpack.c.l.b16 %v238
        %v435 = vunpack.c.h.b16 %v238
        %v436 = vunpack.c.l.b16 %v239
        %v437 = vunpack.c.h.b16 %v239
        %v438 = vunpack.c.l.b16 %v240
        %v439 = vunpack.c.h.b16 %v240
        %v440 = vunpack.c.l.b16 %v241
        %v441 = vunpack.c.h.b16 %v241
        %v442 = vunpack.c.l.b16 %v242
        %v443 = vunpack.c.h.b16 %v242
        %v444 = vunpack.c.l.b16 %v243
        %v445 = vunpack.c.h.b16 %v243
        %v446 = vunpack.c.l.b16 %v244
        %v447 = vunpack.c.h.b16 %v244
        %v448 = vunpack.c.l.b16 %v245
        %v449 = vunpack.c.h.b16 %v245
        %v450 = vunpack.c.l.b16 %v246
        %v451 = vunpack.c.h.b16 %v246
        %v452 = vunpack.c.l.b16 %v247
        %v453 = vunpack.c.h.b16 %v247
        %v454 = vunpack.c.l.b16 %v248
        %v455 = vunpack.c.h.b16 %v248
        %v456 = vunpack.c.l.b16 %v249
        %v457 = vunpack.c.h.b16 %v249
        %v458 = vunpack.c.l.b16 %v250
        %v459 = vunpack.c.h.b16 %v250
        %v460 = vunpack.c.l.b16 %v251
        %v461 = vunpack.c.h.b16 %v251
        %v462 = vunpack.c.l.b16 %v252
        %v463 = vunpack.c.h.b16 %v252
        %v464 = vunpack.c.l.b16 %v253
        %v465 = vunpack.c.h.b16 %v253
        %v466 = vunpack.c.l.b16 %v254
        %v467 = vunpack.c.h.b16 %v254
        %v468 = vunpack.c.l.b16 %v255
        %v469 = vunpack.c.h.b16 %v255
        %v470 = vunpack.c.l.b16 %v256
        %v471 = vunpack.c.h.b16 %v256
        %v472 = vunpack.c.l.b16 %v257
        %v473 = vunpack.c.h.b16 %v257
        %v474 = vunpack.c.l.b16 %v258
        %v475 = vunpack.c.h.b16 %v258
        %v476 = vunpack.c.l.b16 %v259
        %v477 = vunpack.c.h.b16 %v259
        %v478 = vunpack.c.l.b16 %v260
        %v479 = vunpack.c.h.b16 %v260
        %v480 = vunpack.c.l.b16 %v261
        %v481 = vunpack.c.h.b16 %v261
        %v482 = vunpack.c.l.b16 %v262
        %v483 = vunpack.c.h.b16 %v262
        %v484 = vunpack.c.l.b16 %v263
        %v485 = vunpack.c.h.b16 %v263
        %v486 = vunpack.c.l.b16 %v264
        %v487 = vunpack.c.h.b16 %v264
        %v488 = vunpack.c.l.b16 %v265
        %v489 = vunpack.c.h.b16 %v265
        %v490 = vpack.c.b16 %v364, %v362
        %v491 = vpack.c.b16 %v365, %v363
        %v492 = vpack.c.b16 %v368, %v366
        %v493 = vpack.c.b16 %v369, %v367
        %v494 = vpack.c.b16 %v372, %v370
        %v495 = vpack.c.b16 %v373, %v371
        %v496 = vpack.c.b16 %v376, %v374
        %v497 = vpack.c.b16 %v377, %v375
        %v498 = vpack.c.b16 %v380, %v378
        %v499 = vpack.c.b16 %v381, %v379
        %v500 = vpack.c.b16 %v384, %v382
        %v501 = vpack.c.b16 %v385, %v383
        %v502 = vpack.c.b16 %v388, %v386
        %v503 = vpack.c.b16 %v389, %v387
        %v504 = vpack.c.b16 %v392, %v390
        %v505 = vpack.c.b16 %v393, %v391
        %v506 = vpack.c.b16 %v396, %v394
        %v507 = vpack.c.b16 %v397, %v395
        %v508 = vpack.c.b16 %v400, %v398
        %v509 = vpack.c.b16 %v401, %v399
        %v510 = vpack.c.b16 %v404, %v402
        %v511 = vpack.c.b16 %v405, %v403
        %v512 = vpack.c.b16 %v408, %v406
        %v513 = vpack.c.b16 %v409, %v407
        %v514 = vpack.c.b16 %v412, %v410
        %v515 = vpack.c.b16 %v413, %v411
        %v516 = vpack.c.b16 %v416, %v414
        %v517 = vpack.c.b16 %v417, %v415
        %v518 = vpack.c.b16 %v420, %v418
        %v519 = vpack.c.b16 %v421, %v419
        %v520 = vpack.c.b16 %v424, %v422
        %v521 = vpack.c.b16 %v425, %v423
        %v522 = vpack.c.b16 %v428, %v426
        %v523 = vpack.c.b16 %v429, %v427
        %v524 = vpack.c.b16 %v432, %v430
        %v525 = vpack.c.b16 %v433, %v431
        %v526 = vpack.c.b16 %v436, %v434
        %v527 = vpack.c.b16 %v437, %v435
        %v528 = vpack.c.b16 %v440, %v438
        %v529 = vpack.c.b16 %v441, %v439
        %v530 = vpack.c.b16 %v444, %v442
        %v531 = vpack.c.b16 %v445, %v443
        %v532 = vpack.c.b16 %v448, %v446
        %v533 = vpack.c.b16 %v449, %v447
        %v534 = vpack.c.b16 %v452, %v450
        %v535 = vpack.c.b16 %v453, %v451
        %v536 = vpack.c.b16 %v456, %v454
        %v537 = vpack.c.b16 %v457, %v455
        %v538 = vpack.c.b16 %v460, %v458
        %v539 = vpack.c.b16 %v461, %v459
        %v540 = vpack.c.b16 %v464, %v462
        %v541 = vpack.c.b16 %v465, %v463
        %v542 = vpack.c.b16 %v468, %v466
        %v543 = vpack.c.b16 %v469, %v467
        %v544 = vpack.c.b16 %v472, %v470
        %v545 = vpack.c.b16 %v473, %v471
        %v546 = vpack.c.b16 %v476, %v474
        %v547 = vpack.c.b16 %v477, %v475
        %v548 = vpack.c.b16 %v480, %v478
        %v549 = vpack.c.b16 %v481, %v479
        %v550 = vpack.c.b16 %v484, %v482
        %v551 = vpack.c.b16 %v485, %v483
        %v552 = vpack.c.b16 %v488, %v486
        %v553 = vpack.c.b16 %v489, %v487
        %v650 = vunpack.c.l.b16 %v266
        %v651 = vunpack.c.l.b16 %v267
        %v652 = vunpack.c.l.b16 %v268
        %v653 = vunpack.c.l.b16 %v269
        %v654 = vunpack.c.l.b16 %v270
        %v655 = vunpack.c.l.b16 %v271
        %v656 = vunpack.c.l.b16 %v272
        %v657 = vunpack.c.l.b16 %v273
        %v658 = vunpack.c.l.b16 %v274
        %v659 = vunpack.c.l.b16 %v275
        %v660 = vunpack.c.l.b16 %v276
        %v661 = vunpack.c.l.b16 %v277
        %v662 = vunpack.c.l.b16 %v278
        %v663 = vunpack.c.l.b16 %v279
        %v664 = vunpack.c.l.b16 %v280
        %v665 = vunpack.c.l.b16 %v281
        %v666 = vunpack.c.l.b16 %v282
        %v667 = vunpack.c.l.b16 %v283
        %v668 = vunpack.c.l.b16 %v284
        %v669 = vunpack.c.l.b16 %v285
        %v670 = vunpack.c.l.b16 %v286
        %v671 = vunpack.c.l.b16 %v287
        %v672 = vunpack.c.l.b16 %v288
        %v673 = vunpack.c.l.b16 %v289
        %v674 = vunpack.c.l.b16 %v290
        %v675 = vunpack.c.l.b16 %v291
        %v676 = vunpack.c.l.b16 %v292
        %v677 = vunpack.c.l.b16 %v293
        %v678 = vunpack.c.l.b16 %v294
        %v679 = vunpack.c.l.b16 %v295
        %v680 = vunpack.c.l.b16 %v296
        %v681 = vunpack.c.l.b16 %v297
        %v682 = vpack.c.b16 %v651, %v650
        %v683 = vpack.c.b16 %v653, %v652
        %v684 = vpack.c.b16 %v655, %v654
        %v685 = vpack.c.b16 %v657, %v656
        %v686 = vpack.c.b16 %v659, %v658
        %v687 = vpack.c.b16 %v661, %v660
        %v688 = vpack.c.b16 %v663, %v662
        %v689 = vpack.c.b16 %v665, %v664
        %v690 = vpack.c.b16 %v667, %v666
        %v691 = vpack.c.b16 %v669, %v668
        %v692 = vpack.c.b16 %v671, %v670
        %v693 = vpack.c.b16 %v673, %v672
        %v694 = vpack.c.b16 %v675, %v674
        %v695 = vpack.c.b16 %v677, %v676
        %v696 = vpack.c.b16 %v679, %v678
        %v697 = vpack.c.b16 %v681, %v680
        %714 = vmatprep.subr.bf16.mxu0 0
        %715 = vmatpush1.bf16.msra.mxu0 %v682
        %716 = vmatprep.subr.bf16.mxu0 0
        %717 = vmatpush1.bf16.msra.mxu0 %v683
        %718 = vmatprep.subr.bf16.mxu0 0
        %719 = vmatpush1.bf16.msra.mxu0 %v684
        %720 = vmatprep.subr.bf16.mxu0 0
        %721 = vmatpush1.bf16.msra.mxu0 %v685
        %722 = vmatprep.subr.bf16.mxu0 0
        %723 = vmatpush1.bf16.msra.mxu0 %v686
        %724 = vmatprep.subr.bf16.mxu0 0
        %725 = vmatpush1.bf16.msra.mxu0 %v687
        %726 = vmatprep.subr.bf16.mxu0 0
        %727 = vmatpush1.bf16.msra.mxu0 %v688
        %728 = vmatprep.subr.bf16.mxu0 0
        %729 = vmatpush1.bf16.msra.mxu0 %v689
        %730 = vmatprep.subr.bf16.mxu0 0
        %731 = vmatpush1.bf16.msra.mxu0 %v690
        %732 = vmatprep.subr.bf16.mxu0 0
        %733 = vmatpush1.bf16.msra.mxu0 %v691
        %734 = vmatprep.subr.bf16.mxu0 0
        %735 = vmatpush1.bf16.msra.mxu0 %v692
        %736 = vmatprep.subr.bf16.mxu0 0
        %737 = vmatpush1.bf16.msra.mxu0 %v693
        %738 = vmatprep.subr.bf16.mxu0 0
        %739 = vmatpush1.bf16.msra.mxu0 %v694
        %740 = vmatprep.subr.bf16.mxu0 0
        %741 = vmatpush1.bf16.msra.mxu0 %v695
        %742 = vmatprep.subr.bf16.mxu0 0
        %743 = vmatpush1.bf16.msra.mxu0 %v696
        %744 = vmatprep.subr.bf16.mxu0 0
        %745 = vmatpush1.bf16.msra.mxu0 %v697
        %746 = vmatprep.mubr.bf16.mxu0 %v491
        %747 = vmatmul.mubr.bf16.gmra.mrb[0].mxu0 %v490
        %v748 = vpop.f32.mrb[0].mxu0
        %v749 = vadd.f32 0.0, %v748
        %v750 = vpop.f32.mrb[0].mxu0
        %v751 = vpop.f32.mrb[0].mxu0
        %v752 = vadd.f32 0.0, %v751
        %v753 = vpop.f32.mrb[0].mxu0
        %754 = vmatprep.mubr.bf16.mxu0 %v493
        %755 = vmatmul.mubr.bf16.gmra.mrb[0].mxu0 %v492
        %v756 = vpop.f32.mrb[0].mxu0
        %v757 = vadd.f32 0.0, %v756
        %v758 = vpop.f32.mrb[0].mxu0
        %v759 = vpop.f32.mrb[0].mxu0
        %v760 = vadd.f32 0.0, %v759
        %v761 = vpop.f32.mrb[0].mxu0
        %762 = vmatprep.mubr.bf16.mxu0 %v495
        %763 = vmatmul.mubr.bf16.gmra.mrb[0].mxu0 %v494
        %v764 = vpop.f32.mrb[0].mxu0
        %v765 = vadd.f32 0.0, %v764
        %v766 = vpop.f32.mrb[0].mxu0
        %v767 = vpop.f32.mrb[0].mxu0
        %v768 = vadd.f32 0.0, %v767
        %v769 = vpop.f32.mrb[0].mxu0
        %770 = vmatprep.mubr.bf16.mxu0 %v497
        %771 = vmatmul.mubr.bf16.gmra.mrb[0].mxu0 %v496
        %v772 = vpop.f32.mrb[0].mxu0
        %v773 = vadd.f32 0.0, %v772
        %v774 = vpop.f32.mrb[0].mxu0
        %v775 = vpop.f32.mrb[0].mxu0
        %v776 = vadd.f32 0.0, %v775
        %v777 = vpop.f32.mrb[0].mxu0
        %778 = vmatprep.mubr.bf16.mxu0 %v499
        %779 = vmatmul.mubr.bf16.gmra.mrb[0].mxu0 %v498
        %v780 = vpop.f32.mrb[0].mxu0
        %v781 = vadd.f32 0.0, %v780
        %v782 = vpop.f32.mrb[0].mxu0
        %v783 = vpop.f32.mrb[0].mxu0
        %v784 = vadd.f32 0.0, %v783
        %v785 = vpop.f32.mrb[0].mxu0
        %786 = vmatprep.mubr.bf16.mxu0 %v501
        %787 = vmatmul.mubr.bf16.gmra.mrb[0].mxu0 %v500
        %v788 = vpop.f32.mrb[0].mxu0
        %v789 = vadd.f32 0.0, %v788
        %v790 = vpop.f32.mrb[0].mxu0
        %v791 = vpop.f32.mrb[0].mxu0
        %v792 = vadd.f32 0.0, %v791
        %v793 = vpop.f32.mrb[0].mxu0
        %794 = vmatprep.mubr.bf16.mxu0 %v503
        %795 = vmatmul.mubr.bf16.gmra.mrb[0].mxu0 %v502
        %v796 = vpop.f32.mrb[0].mxu0
        %v797 = vadd.f32 0.0, %v796
        %v798 = vpop.f32.mrb[0].mxu0
        %v799 = vpop.f32.mrb[0].mxu0
        %v800 = vadd.f32 0.0, %v799
        %v801 = vpop.f32.mrb[0].mxu0
        %802 = vmatprep.mubr.bf16.mxu0 %v505
        %803 = vmatmul.mubr.bf16.gmra.mrb[0].mxu0 %v504
        %v804 = vpop.f32.mrb[0].mxu0
        %v805 = vadd.f32 0.0, %v804
        %v806 = vpop.f32.mrb[0].mxu0
        %v807 = vpop.f32.mrb[0].mxu0
        %v808 = vadd.f32 0.0, %v807
        %v809 = vpop.f32.mrb[0].mxu0
        %810 = vmatprep.mubr.bf16.mxu0 %v507
        %811 = vmatmul.mubr.bf16.gmra.mrb[0].mxu0 %v506
        %v812 = vpop.f32.mrb[0].mxu0
        %v813 = vadd.f32 0.0, %v812
        %v814 = vpop.f32.mrb[0].mxu0
        %v815 = vpop.f32.mrb[0].mxu0
        %v816 = vadd.f32 0.0, %v815
        %v817 = vpop.f32.mrb[0].mxu0
        %818 = vmatprep.mubr.bf16.mxu0 %v509
        %819 = vmatmul.mubr.bf16.gmra.mrb[0].mxu0 %v508
        %v820 = vpop.f32.mrb[0].mxu0
        %v821 = vadd.f32 0.0, %v820
        %v822 = vpop.f32.mrb[0].mxu0
        %v823 = vpop.f32.mrb[0].mxu0
        %v824 = vadd.f32 0.0, %v823
        %v825 = vpop.f32.mrb[0].mxu0
        %826 = vmatprep.mubr.bf16.mxu0 %v511
        %827 = vmatmul.mubr.bf16.gmra.mrb[0].mxu0 %v510
        %v828 = vpop.f32.mrb[0].mxu0
        %v829 = vadd.f32 0.0, %v828
        %v830 = vpop.f32.mrb[0].mxu0
        %v831 = vpop.f32.mrb[0].mxu0
        %v832 = vadd.f32 0.0, %v831
        %v833 = vpop.f32.mrb[0].mxu0
        %834 = vmatprep.mubr.bf16.mxu0 %v513
        %835 = vmatmul.mubr.bf16.gmra.mrb[0].mxu0 %v512
        %v836 = vpop.f32.mrb[0].mxu0
        %v837 = vadd.f32 0.0, %v836
        %v838 = vpop.f32.mrb[0].mxu0
        %v839 = vpop.f32.mrb[0].mxu0
        %v840 = vadd.f32 0.0, %v839
        %v841 = vpop.f32.mrb[0].mxu0
        %842 = vmatprep.mubr.bf16.mxu0 %v515
        %843 = vmatmul.mubr.bf16.gmra.mrb[0].mxu0 %v514
        %v844 = vpop.f32.mrb[0].mxu0
        %v845 = vadd.f32 0.0, %v844
        %v846 = vpop.f32.mrb[0].mxu0
        %v847 = vpop.f32.mrb[0].mxu0
        %v848 = vadd.f32 0.0, %v847
        %v849 = vpop.f32.mrb[0].mxu0
        %850 = vmatprep.mubr.bf16.mxu0 %v517
        %851 = vmatmul.mubr.bf16.gmra.mrb[0].mxu0 %v516
        %v852 = vpop.f32.mrb[0].mxu0
        %v853 = vadd.f32 0.0, %v852
        %v854 = vpop.f32.mrb[0].mxu0
        %v855 = vpop.f32.mrb[0].mxu0
        %v856 = vadd.f32 0.0, %v855
        %v857 = vpop.f32.mrb[0].mxu0
        %858 = vmatprep.mubr.bf16.mxu0 %v519
        %859 = vmatmul.mubr.bf16.gmra.mrb[0].mxu0 %v518
        %v860 = vpop.f32.mrb[0].mxu0
        %v861 = vadd.f32 0.0, %v860
        %v862 = vpop.f32.mrb[0].mxu0
        %v863 = vpop.f32.mrb[0].mxu0
        %v864 = vadd.f32 0.0, %v863
        %v865 = vpop.f32.mrb[0].mxu0
        %866 = vmatprep.mubr.bf16.mxu0 %v521
        %867 = vmatmul.mubr.bf16.gmra.mrb[0].mxu0 %v520
        %v868 = vpop.f32.mrb[0].mxu0
        %v869 = vadd.f32 0.0, %v868
        %v870 = vpop.f32.mrb[0].mxu0
        %v871 = vpop.f32.mrb[0].mxu0
        %v872 = vadd.f32 0.0, %v871
        %v873 = vpop.f32.mrb[0].mxu0
        %874 = vmatprep.mubr.bf16.mxu0 %v523
        %875 = vmatmul.mubr.bf16.gmra.mrb[0].mxu0 %v522
        %v876 = vpop.f32.mrb[0].mxu0
        %v877 = vadd.f32 0.0, %v876
        %v878 = vpop.f32.mrb[0].mxu0
        %v879 = vpop.f32.mrb[0].mxu0
        %v880 = vadd.f32 0.0, %v879
        %v881 = vpop.f32.mrb[0].mxu0
        %882 = vmatprep.mubr.bf16.mxu0 %v525
        %883 = vmatmul.mubr.bf16.gmra.mrb[0].mxu0 %v524
        %v884 = vpop.f32.mrb[0].mxu0
        %v885 = vadd.f32 0.0, %v884
        %v886 = vpop.f32.mrb[0].mxu0
        %v887 = vpop.f32.mrb[0].mxu0
        %v888 = vadd.f32 0.0, %v887
        %v889 = vpop.f32.mrb[0].mxu0
        %890 = vmatprep.mubr.bf16.mxu0 %v527
        %891 = vmatmul.mubr.bf16.gmra.mrb[0].mxu0 %v526
        %v892 = vpop.f32.mrb[0].mxu0
        %v893 = vadd.f32 0.0, %v892
        %v894 = vpop.f32.mrb[0].mxu0
        %v895 = vpop.f32.mrb[0].mxu0
        %v896 = vadd.f32 0.0, %v895
        %v897 = vpop.f32.mrb[0].mxu0
        %898 = vmatprep.mubr.bf16.mxu0 %v529
        %899 = vmatmul.mubr.bf16.gmra.mrb[0].mxu0 %v528
        %v900 = vpop.f32.mrb[0].mxu0
        %v901 = vadd.f32 0.0, %v900
        %v902 = vpop.f32.mrb[0].mxu0
        %v903 = vpop.f32.mrb[0].mxu0
        %v904 = vadd.f32 0.0, %v903
        %v905 = vpop.f32.mrb[0].mxu0
        %906 = vmatprep.mubr.bf16.mxu0 %v531
        %907 = vmatmul.mubr.bf16.gmra.mrb[0].mxu0 %v530
        %v908 = vpop.f32.mrb[0].mxu0
        %v909 = vadd.f32 0.0, %v908
        %v910 = vpop.f32.mrb[0].mxu0
        %v911 = vpop.f32.mrb[0].mxu0
        %v912 = vadd.f32 0.0, %v911
        %v913 = vpop.f32.mrb[0].mxu0
        %914 = vmatprep.mubr.bf16.mxu0 %v533
        %915 = vmatmul.mubr.bf16.gmra.mrb[0].mxu0 %v532
        %v916 = vpop.f32.mrb[0].mxu0
        %v917 = vadd.f32 0.0, %v916
        %v918 = vpop.f32.mrb[0].mxu0
        %v919 = vpop.f32.mrb[0].mxu0
        %v920 = vadd.f32 0.0, %v919
        %v921 = vpop.f32.mrb[0].mxu0
        %922 = vmatprep.mubr.bf16.mxu0 %v535
        %923 = vmatmul.mubr.bf16.gmra.mrb[0].mxu0 %v534
        %v924 = vpop.f32.mrb[0].mxu0
        %v925 = vadd.f32 0.0, %v924
        %v926 = vpop.f32.mrb[0].mxu0
        %v927 = vpop.f32.mrb[0].mxu0
        %v928 = vadd.f32 0.0, %v927
        %v929 = vpop.f32.mrb[0].mxu0
        %930 = vmatprep.mubr.bf16.mxu0 %v537
        %931 = vmatmul.mubr.bf16.gmra.mrb[0].mxu0 %v536
        %v932 = vpop.f32.mrb[0].mxu0
        %v933 = vadd.f32 0.0, %v932
        %v934 = vpop.f32.mrb[0].mxu0
        %v935 = vpop.f32.mrb[0].mxu0
        %v936 = vadd.f32 0.0, %v935
        %v937 = vpop.f32.mrb[0].mxu0
        %938 = vmatprep.mubr.bf16.mxu0 %v539
        %939 = vmatmul.mubr.bf16.gmra.mrb[0].mxu0 %v538
        %v940 = vpop.f32.mrb[0].mxu0
        %v941 = vadd.f32 0.0, %v940
        %v942 = vpop.f32.mrb[0].mxu0
        %v943 = vpop.f32.mrb[0].mxu0
        %v944 = vadd.f32 0.0, %v943
        %v945 = vpop.f32.mrb[0].mxu0
        %946 = vmatprep.mubr.bf16.mxu0 %v541
        %947 = vmatmul.mubr.bf16.gmra.mrb[0].mxu0 %v540
        %v948 = vpop.f32.mrb[0].mxu0
        %v949 = vadd.f32 0.0, %v948
        %v950 = vpop.f32.mrb[0].mxu0
        %v951 = vpop.f32.mrb[0].mxu0
        %v952 = vadd.f32 0.0, %v951
        %v953 = vpop.f32.mrb[0].mxu0
        %954 = vmatprep.mubr.bf16.mxu0 %v543
        %955 = vmatmul.mubr.bf16.gmra.mrb[0].mxu0 %v542
        %v956 = vpop.f32.mrb[0].mxu0
        %v957 = vadd.f32 0.0, %v956
        %v958 = vpop.f32.mrb[0].mxu0
        %v959 = vpop.f32.mrb[0].mxu0
        %v960 = vadd.f32 0.0, %v959
        %v961 = vpop.f32.mrb[0].mxu0
        %962 = vmatprep.mubr.bf16.mxu0 %v545
        %963 = vmatmul.mubr.bf16.gmra.mrb[0].mxu0 %v544
        %v964 = vpop.f32.mrb[0].mxu0
        %v965 = vadd.f32 0.0, %v964
        %v966 = vpop.f32.mrb[0].mxu0
        %v967 = vpop.f32.mrb[0].mxu0
        %v968 = vadd.f32 0.0, %v967
        %v969 = vpop.f32.mrb[0].mxu0
        %970 = vmatprep.mubr.bf16.mxu0 %v547
        %971 = vmatmul.mubr.bf16.gmra.mrb[0].mxu0 %v546
        %v972 = vpop.f32.mrb[0].mxu0
        %v973 = vadd.f32 0.0, %v972
        %v974 = vpop.f32.mrb[0].mxu0
        %v975 = vpop.f32.mrb[0].mxu0
        %v976 = vadd.f32 0.0, %v975
        %v977 = vpop.f32.mrb[0].mxu0
        %978 = vmatprep.mubr.bf16.mxu0 %v549
        %979 = vmatmul.mubr.bf16.gmra.mrb[0].mxu0 %v548
        %v980 = vpop.f32.mrb[0].mxu0
        %v981 = vadd.f32 0.0, %v980
        %v982 = vpop.f32.mrb[0].mxu0
        %v983 = vpop.f32.mrb[0].mxu0
        %v984 = vadd.f32 0.0, %v983
        %v985 = vpop.f32.mrb[0].mxu0
        %986 = vmatprep.mubr.bf16.mxu0 %v551
        %987 = vmatmul.mubr.bf16.gmra.mrb[0].mxu0 %v550
        %v988 = vpop.f32.mrb[0].mxu0
        %v989 = vadd.f32 0.0, %v988
        %v990 = vpop.f32.mrb[0].mxu0
        %v991 = vpop.f32.mrb[0].mxu0
        %v992 = vadd.f32 0.0, %v991
        %v993 = vpop.f32.mrb[0].mxu0
        %994 = vmatprep.mubr.bf16.mxu0 %v553
        %995 = vmatmul.mubr.bf16.gmra.mrb[0].mxu0 %v552
        %v996 = vpop.f32.mrb[0].mxu0
        %v997 = vadd.f32 0.0, %v996
        %v998 = vpop.f32.mrb[0].mxu0
        %v999 = vpop.f32.mrb[0].mxu0
        %v1000 = vadd.f32 0.0, %v999
        %v1001 = vpop.f32.mrb[0].mxu0
        %1002 = vdwg.mxu0
        %v1003 = vmax.f32 %v749, 0.0
        %v1004 = vmax.f32 %v752, 0.0
        %v1005 = vmax.f32 %v757, 0.0
        %v1006 = vmax.f32 %v760, 0.0
        %v1007 = vmax.f32 %v765, 0.0
        %v1008 = vmax.f32 %v768, 0.0
        %v1009 = vmax.f32 %v773, 0.0
        %v1010 = vmax.f32 %v776, 0.0
        %v1011 = vmax.f32 %v781, 0.0
        %v1012 = vmax.f32 %v784, 0.0
        %v1013 = vmax.f32 %v789, 0.0
        %v1014 = vmax.f32 %v792, 0.0
        %v1015 = vmax.f32 %v797, 0.0
        %v1016 = vmax.f32 %v800, 0.0
        %v1017 = vmax.f32 %v805, 0.0
        %v1018 = vmax.f32 %v808, 0.0
        %v1019 = vmax.f32 %v813, 0.0
        %v1020 = vmax.f32 %v816, 0.0
        %v1021 = vmax.f32 %v821, 0.0
        %v1022 = vmax.f32 %v824, 0.0
        %v1023 = vmax.f32 %v829, 0.0
        %v1024 = vmax.f32 %v832, 0.0
        %v1025 = vmax.f32 %v837, 0.0
        %v1026 = vmax.f32 %v840, 0.0
        %v1027 = vmax.f32 %v845, 0.0
        %v1028 = vmax.f32 %v848, 0.0
        %v1029 = vmax.f32 %v853, 0.0
        %v1030 = vmax.f32 %v856, 0.0
        %v1031 = vmax.f32 %v861, 0.0
        %v1032 = vmax.f32 %v864, 0.0
        %v1033 = vmax.f32 %v869, 0.0
        %v1034 = vmax.f32 %v872, 0.0
        %v1035 = vmax.f32 %v877, 0.0
        %v1036 = vmax.f32 %v880, 0.0
        %v1037 = vmax.f32 %v885, 0.0
        %v1038 = vmax.f32 %v888, 0.0
        %v1039 = vmax.f32 %v893, 0.0
        %v1040 = vmax.f32 %v896, 0.0
        %v1041 = vmax.f32 %v901, 0.0
        %v1042 = vmax.f32 %v904, 0.0
        %v1043 = vmax.f32 %v909, 0.0
        %v1044 = vmax.f32 %v912, 0.0
        %v1045 = vmax.f32 %v917, 0.0
        %v1046 = vmax.f32 %v920, 0.0
        %v1047 = vmax.f32 %v925, 0.0
        %v1048 = vmax.f32 %v928, 0.0
        %v1049 = vmax.f32 %v933, 0.0
        %v1050 = vmax.f32 %v936, 0.0
        %v1051 = vmax.f32 %v941, 0.0
        %v1052 = vmax.f32 %v944, 0.0
        %v1053 = vmax.f32 %v949, 0.0
        %v1054 = vmax.f32 %v952, 0.0
        %v1055 = vmax.f32 %v957, 0.0
        %v1056 = vmax.f32 %v960, 0.0
        %v1057 = vmax.f32 %v965, 0.0
        %v1058 = vmax.f32 %v968, 0.0
        %v1059 = vmax.f32 %v973, 0.0
        %v1060 = vmax.f32 %v976, 0.0
        %v1061 = vmax.f32 %v981, 0.0
        %v1062 = vmax.f32 %v984, 0.0
        %v1063 = vmax.f32 %v989, 0.0
        %v1064 = vmax.f32 %v992, 0.0
        %v1065 = vmax.f32 %v997, 0.0
        %v1066 = vmax.f32 %v1000, 0.0
        %v1067 = vpack.c.bf16 %v1004, %v1003
        %v1068 = vpack.c.bf16 %v1006, %v1005
        %v1069 = vpack.c.bf16 %v1008, %v1007
        %v1070 = vpack.c.bf16 %v1010, %v1009
        %v1071 = vpack.c.bf16 %v1012, %v1011
        %v1072 = vpack.c.bf16 %v1014, %v1013
        %v1073 = vpack.c.bf16 %v1016, %v1015
        %v1074 = vpack.c.bf16 %v1018, %v1017
        %v1075 = vpack.c.bf16 %v1020, %v1019
        %v1076 = vpack.c.bf16 %v1022, %v1021
        %v1077 = vpack.c.bf16 %v1024, %v1023
        %v1078 = vpack.c.bf16 %v1026, %v1025
        %v1079 = vpack.c.bf16 %v1028, %v1027
        %v1080 = vpack.c.bf16 %v1030, %v1029
        %v1081 = vpack.c.bf16 %v1032, %v1031
        %v1082 = vpack.c.bf16 %v1034, %v1033
        %v1083 = vpack.c.bf16 %v1036, %v1035
        %v1084 = vpack.c.bf16 %v1038, %v1037
        %v1085 = vpack.c.bf16 %v1040, %v1039
        %v1086 = vpack.c.bf16 %v1042, %v1041
        %v1087 = vpack.c.bf16 %v1044, %v1043
        %v1088 = vpack.c.bf16 %v1046, %v1045
        %v1089 = vpack.c.bf16 %v1048, %v1047
        %v1090 = vpack.c.bf16 %v1050, %v1049
        %v1091 = vpack.c.bf16 %v1052, %v1051
        %v1092 = vpack.c.bf16 %v1054, %v1053
        %v1093 = vpack.c.bf16 %v1056, %v1055
        %v1094 = vpack.c.bf16 %v1058, %v1057
        %v1095 = vpack.c.bf16 %v1060, %v1059
        %v1096 = vpack.c.bf16 %v1062, %v1061
        %v1097 = vpack.c.bf16 %v1064, %v1063
        %v1098 = vpack.c.bf16 %v1066, %v1065
        %v1131 = vunpack.c.l.b16 %v1067
        %v1132 = vunpack.c.h.b16 %v1067
        %v1133 = vunpack.c.l.b16 %v1068
        %v1134 = vunpack.c.h.b16 %v1068
        %v1135 = vunpack.c.l.b16 %v1069
        %v1136 = vunpack.c.h.b16 %v1069
        %v1137 = vunpack.c.l.b16 %v1070
        %v1138 = vunpack.c.h.b16 %v1070
        %v1139 = vunpack.c.l.b16 %v1071
        %v1140 = vunpack.c.h.b16 %v1071
        %v1141 = vunpack.c.l.b16 %v1072
        %v1142 = vunpack.c.h.b16 %v1072
        %v1143 = vunpack.c.l.b16 %v1073
        %v1144 = vunpack.c.h.b16 %v1073
        %v1145 = vunpack.c.l.b16 %v1074
        %v1146 = vunpack.c.h.b16 %v1074
        %v1147 = vunpack.c.l.b16 %v1075
        %v1148 = vunpack.c.h.b16 %v1075
        %v1149 = vunpack.c.l.b16 %v1076
        %v1150 = vunpack.c.h.b16 %v1076
        %v1151 = vunpack.c.l.b16 %v1077
        %v1152 = vunpack.c.h.b16 %v1077
        %v1153 = vunpack.c.l.b16 %v1078
        %v1154 = vunpack.c.h.b16 %v1078
        %v1155 = vunpack.c.l.b16 %v1079
        %v1156 = vunpack.c.h.b16 %v1079
        %v1157 = vunpack.c.l.b16 %v1080
        %v1158 = vunpack.c.h.b16 %v1080
        %v1159 = vunpack.c.l.b16 %v1081
        %v1160 = vunpack.c.h.b16 %v1081
        %v1161 = vunpack.c.l.b16 %v1082
        %v1162 = vunpack.c.h.b16 %v1082
        %v1163 = vunpack.c.l.b16 %v1083
        %v1164 = vunpack.c.h.b16 %v1083
        %v1165 = vunpack.c.l.b16 %v1084
        %v1166 = vunpack.c.h.b16 %v1084
        %v1167 = vunpack.c.l.b16 %v1085
        %v1168 = vunpack.c.h.b16 %v1085
        %v1169 = vunpack.c.l.b16 %v1086
        %v1170 = vunpack.c.h.b16 %v1086
        %v1171 = vunpack.c.l.b16 %v1087
        %v1172 = vunpack.c.h.b16 %v1087
        %v1173 = vunpack.c.l.b16 %v1088
        %v1174 = vunpack.c.h.b16 %v1088
        %v1175 = vunpack.c.l.b16 %v1089
        %v1176 = vunpack.c.h.b16 %v1089
        %v1177 = vunpack.c.l.b16 %v1090
        %v1178 = vunpack.c.h.b16 %v1090
        %v1179 = vunpack.c.l.b16 %v1091
        %v1180 = vunpack.c.h.b16 %v1091
        %v1181 = vunpack.c.l.b16 %v1092
        %v1182 = vunpack.c.h.b16 %v1092
        %v1183 = vunpack.c.l.b16 %v1093
        %v1184 = vunpack.c.h.b16 %v1093
        %v1185 = vunpack.c.l.b16 %v1094
        %v1186 = vunpack.c.h.b16 %v1094
        %v1187 = vunpack.c.l.b16 %v1095
        %v1188 = vunpack.c.h.b16 %v1095
        %v1189 = vunpack.c.l.b16 %v1096
        %v1190 = vunpack.c.h.b16 %v1096
        %v1191 = vunpack.c.l.b16 %v1097
        %v1192 = vunpack.c.h.b16 %v1097
        %v1193 = vunpack.c.l.b16 %v1098
        %v1194 = vunpack.c.h.b16 %v1098
        %v1195 = vpack.c.b16 %v1131, %v1131
        %v1196 = vpack.c.b16 %v1132, %v1132
        %v1197 = vpack.c.b16 %v1133, %v1133
        %v1198 = vpack.c.b16 %v1134, %v1134
        %v1199 = vpack.c.b16 %v1135, %v1135
        %v1200 = vpack.c.b16 %v1136, %v1136
        %v1201 = vpack.c.b16 %v1137, %v1137
        %v1202 = vpack.c.b16 %v1138, %v1138
        %v1203 = vpack.c.b16 %v1139, %v1139
        %v1204 = vpack.c.b16 %v1140, %v1140
        %v1205 = vpack.c.b16 %v1141, %v1141
        %v1206 = vpack.c.b16 %v1142, %v1142
        %v1207 = vpack.c.b16 %v1143, %v1143
        %v1208 = vpack.c.b16 %v1144, %v1144
        %v1209 = vpack.c.b16 %v1145, %v1145
        %v1210 = vpack.c.b16 %v1146, %v1146
        %v1211 = vpack.c.b16 %v1147, %v1147
        %v1212 = vpack.c.b16 %v1148, %v1148
        %v1213 = vpack.c.b16 %v1149, %v1149
        %v1214 = vpack.c.b16 %v1150, %v1150
        %v1215 = vpack.c.b16 %v1151, %v1151
        %v1216 = vpack.c.b16 %v1152, %v1152
        %v1217 = vpack.c.b16 %v1153, %v1153
        %v1218 = vpack.c.b16 %v1154, %v1154
        %v1219 = vpack.c.b16 %v1155, %v1155
        %v1220 = vpack.c.b16 %v1156, %v1156
        %v1221 = vpack.c.b16 %v1157, %v1157
        %v1222 = vpack.c.b16 %v1158, %v1158
        %v1223 = vpack.c.b16 %v1159, %v1159
        %v1224 = vpack.c.b16 %v1160, %v1160
        %v1225 = vpack.c.b16 %v1161, %v1161
        %v1226 = vpack.c.b16 %v1162, %v1162
        %v1227 = vpack.c.b16 %v1163, %v1163
        %v1228 = vpack.c.b16 %v1164, %v1164
        %v1229 = vpack.c.b16 %v1165, %v1165
        %v1230 = vpack.c.b16 %v1166, %v1166
        %v1231 = vpack.c.b16 %v1167, %v1167
        %v1232 = vpack.c.b16 %v1168, %v1168
        %v1233 = vpack.c.b16 %v1169, %v1169
        %v1234 = vpack.c.b16 %v1170, %v1170
        %v1235 = vpack.c.b16 %v1171, %v1171
        %v1236 = vpack.c.b16 %v1172, %v1172
        %v1237 = vpack.c.b16 %v1173, %v1173
        %v1238 = vpack.c.b16 %v1174, %v1174
        %v1239 = vpack.c.b16 %v1175, %v1175
        %v1240 = vpack.c.b16 %v1176, %v1176
        %v1241 = vpack.c.b16 %v1177, %v1177
        %v1242 = vpack.c.b16 %v1178, %v1178
        %v1243 = vpack.c.b16 %v1179, %v1179
        %v1244 = vpack.c.b16 %v1180, %v1180
        %v1245 = vpack.c.b16 %v1181, %v1181
        %v1246 = vpack.c.b16 %v1182, %v1182
        %v1247 = vpack.c.b16 %v1183, %v1183
        %v1248 = vpack.c.b16 %v1184, %v1184
        %v1249 = vpack.c.b16 %v1185, %v1185
        %v1250 = vpack.c.b16 %v1186, %v1186
        %v1251 = vpack.c.b16 %v1187, %v1187
        %v1252 = vpack.c.b16 %v1188, %v1188
        %v1253 = vpack.c.b16 %v1189, %v1189
        %v1254 = vpack.c.b16 %v1190, %v1190
        %v1255 = vpack.c.b16 %v1191, %v1191
        %v1256 = vpack.c.b16 %v1192, %v1192
        %v1257 = vpack.c.b16 %v1193, %v1193
        %v1258 = vpack.c.b16 %v1194, %v1194
        %1323 = vst [vmem:[%s198] sm:$0xf] %v1195
        %1324 = vst [vmem:[%s198 + $0x4] sm:$0xf] %v1196
        %1325 = vst [vmem:[%s198 + $0x8] sm:$0xf] %v1197
        %1326 = vst [vmem:[%s198 + $0xc] sm:$0xf] %v1198
        %1327 = vst [vmem:[%s198 + $0x10] sm:$0xf] %v1199
        %1328 = vst [vmem:[%s198 + $0x14] sm:$0xf] %v1200
        %1329 = vst [vmem:[%s198 + $0x18] sm:$0xf] %v1201
        %1330 = vst [vmem:[%s198 + $0x1c] sm:$0xf] %v1202
        %1331 = vst [vmem:[%s198 + $0x20] sm:$0xf] %v1203
        %1332 = vst [vmem:[%s198 + $0x24] sm:$0xf] %v1204
        %1333 = vst [vmem:[%s198 + $0x28] sm:$0xf] %v1205
        %1334 = vst [vmem:[%s198 + $0x2c] sm:$0xf] %v1206
        %1335 = vst [vmem:[%s198 + $0x30] sm:$0xf] %v1207
        %1336 = vst [vmem:[%s198 + $0x34] sm:$0xf] %v1208
        %1337 = vst [vmem:[%s198 + $0x38] sm:$0xf] %v1209
        %1338 = vst [vmem:[%s198 + $0x3c] sm:$0xf] %v1210
        %1339 = vst [vmem:[%s198 + $0x40] sm:$0xf] %v1211
        %1340 = vst [vmem:[%s198 + $0x44] sm:$0xf] %v1212
        %1341 = vst [vmem:[%s198 + $0x48] sm:$0xf] %v1213
        %1342 = vst [vmem:[%s198 + $0x4c] sm:$0xf] %v1214
        %1343 = vst [vmem:[%s198 + $0x50] sm:$0xf] %v1215
        %1344 = vst [vmem:[%s198 + $0x54] sm:$0xf] %v1216
        %1345 = vst [vmem:[%s198 + $0x58] sm:$0xf] %v1217
        %1346 = vst [vmem:[%s198 + $0x5c] sm:$0xf] %v1218
        %1347 = vst [vmem:[%s198 + $0x60] sm:$0xf] %v1219
        %1348 = vst [vmem:[%s198 + $0x64] sm:$0xf] %v1220
        %1349 = vst [vmem:[%s198 + $0x68] sm:$0xf] %v1221
        %1350 = vst [vmem:[%s198 + $0x6c] sm:$0xf] %v1222
        %1351 = vst [vmem:[%s198 + $0x70] sm:$0xf] %v1223
        %1352 = vst [vmem:[%s198 + $0x74] sm:$0xf] %v1224
        %1353 = vst [vmem:[%s198 + $0x78] sm:$0xf] %v1225
        %1354 = vst [vmem:[%s198 + $0x7c] sm:$0xf] %v1226
        %1355 = vst [vmem:[%s198 + $0x80] sm:$0xf] %v1227
        %1356 = vst [vmem:[%s198 + $0x84] sm:$0xf] %v1228
        %1357 = vst [vmem:[%s198 + $0x88] sm:$0xf] %v1229
        %1358 = vst [vmem:[%s198 + $0x8c] sm:$0xf] %v1230
        %1359 = vst [vmem:[%s198 + $0x90] sm:$0xf] %v1231
        %1360 = vst [vmem:[%s198 + $0x94] sm:$0xf] %v1232
        %1361 = vst [vmem:[%s198 + $0x98] sm:$0xf] %v1233
        %1362 = vst [vmem:[%s198 + $0x9c] sm:$0xf] %v1234
        %1363 = vst [vmem:[%s198 + $0xa0] sm:$0xf] %v1235
        %1364 = vst [vmem:[%s198 + $0xa4] sm:$0xf] %v1236
        %1365 = vst [vmem:[%s198 + $0xa8] sm:$0xf] %v1237
        %1366 = vst [vmem:[%s198 + $0xac] sm:$0xf] %v1238
        %1367 = vst [vmem:[%s198 + $0xb0] sm:$0xf] %v1239
        %1368 = vst [vmem:[%s198 + $0xb4] sm:$0xf] %v1240
        %1369 = vst [vmem:[%s198 + $0xb8] sm:$0xf] %v1241
        %1370 = vst [vmem:[%s198 + $0xbc] sm:$0xf] %v1242
        %1371 = vst [vmem:[%s198 + $0xc0] sm:$0xf] %v1243
        %1372 = vst [vmem:[%s198 + $0xc4] sm:$0xf] %v1244
        %1373 = vst [vmem:[%s198 + $0xc8] sm:$0xf] %v1245
        %1374 = vst [vmem:[%s198 + $0xcc] sm:$0xf] %v1246
        %1375 = vst [vmem:[%s198 + $0xd0] sm:$0xf] %v1247
        %1376 = vst [vmem:[%s198 + $0xd4] sm:$0xf] %v1248
        %1377 = vst [vmem:[%s198 + $0xd8] sm:$0xf] %v1249
        %1378 = vst [vmem:[%s198 + $0xdc] sm:$0xf] %v1250
        %1379 = vst [vmem:[%s198 + $0xe0] sm:$0xf] %v1251
        %1380 = vst [vmem:[%s198 + $0xe4] sm:$0xf] %v1252
        %1381 = vst [vmem:[%s198 + $0xe8] sm:$0xf] %v1253
        %1382 = vst [vmem:[%s198 + $0xec] sm:$0xf] %v1254
        %1383 = vst [vmem:[%s198 + $0xf0] sm:$0xf] %v1255
        %1384 = vst [vmem:[%s198 + $0xf4] sm:$0xf] %v1256
        %1385 = vst [vmem:[%s198 + $0xf8] sm:$0xf] %v1257
        %1386 = vst [vmem:[%s198 + $0xfc] sm:$0xf] %v1258
        %s1387 = sand.u32 %s94, 1
        %s1388 = scalar_lea.sflag [#allocation4], %s1387
        %s1389 = sand.u32 %s94, 1
        %s1390 = smul.addr %s1389, 256
        %s1391 = scalar_lea.vmem [#allocation7], %s1390
        // Predicated region
        $region37: #{tpu_custom_call.1} parent=27 // pred_check
          %p1392 = pneg %p104
        $region38: #{tpu_custom_call.1} parent=27 // pred_check_branch
          %1394 = sbr.rel (%p1392) target = $region40
        $region39: #{tpu_custom_call.1} parent=27 // pred_region
          %s1395 = smul.u32 64, %s24
          %s1397 = ssub.s32 4096, 4096
          %1398 = vsyncadd %s1388, %s1397
          %s1399 = sadd.s32 %s25, %s1395
          %s1400 = smul.addr %s1399, 64
          %s1401 = scalar_lea.hbm %s2, %s1400
          %s1402 = sshll.u32 %s1391, 4
          %s1403 = int_to_ptr.vmem [resolvable:$true] %s1402
          %1408 = dma.vmem_to_hbm [thread:$0]  %s1403, 4096, %s1401, %s1388, 64, 64, 4
        $region40: #{tpu_custom_call.1} parent=27 // pred_fallthru
          _
      $region28: #{tpu_custom_call.1} parent=5 // pred_fallthru
        _
      %p1409 = scmp.le.s32.totalorder 2, %s15
      // Predicated region
      $region41: #{tpu_custom_call.1} parent=5 // pred_check
        %p1410 = pneg %p1409
      $region42: #{tpu_custom_call.1} parent=5 // pred_check_branch
        %1412 = sbr.rel (%p1410) target = $region44
      $region43: #{tpu_custom_call.1} parent=5 // pred_region
        %s1413 = ssub.s32 %s15, 2
        // Predicated region
        $region45: #{tpu_custom_call.1} parent=43 // pred_check
          %p1414 = pneg %p110
        $region46: #{tpu_custom_call.1} parent=43 // pred_check_branch
          %1416 = sbr.rel (%p1414) target = $region48
        $region47: #{tpu_custom_call.1} parent=43 // pred_region
          %s1417 = sand.u32 %s95, 1
          %s1418 = scalar_lea.sflag [#allocation4], %s1417
          %s1419 = sand.u32 %s95, 1
          %s1420 = smul.addr %s1419, 256
          %s1421 = scalar_lea.vmem [#allocation7], %s1420
          %1422 = dma.done %s1418, 4096
        $region48: #{tpu_custom_call.1} parent=43 // pred_fallthru
          _
      $region44: #{tpu_custom_call.1} parent=5 // pred_fallthru
        _
    $region6: #{tpu_custom_call.1} parent=1 // loop_footer
      %s19 = sadd.s32 1, %s15
    $region7: #{tpu_custom_call.1} parent=1 // loop_footer_branch
      %14 = sbr.rel target = $region3
    $region8: #{tpu_custom_call.1} parent=1 // loop_exit
      _
    %1423 = vsyncpa [#allocation3], 1
    %s1424 = scalar_lea.sflag [#allocation3], 1
    %1425 = vsyncpa %s1424, 1
    %1426 = vsyncpa [#allocation6], 1
    %1427 = vsyncpa [#allocation4], 1
    %s1428 = scalar_lea.sflag [#allocation4], 1
    %1429 = vsyncpa %s1428, 1

</llo_original>
